<compile_context>
chip_gen: v7x
topology: tpu7x:2x2x1
jax: 0.10.0
libtpu: 0.0.40
codegen_flags: <defaults>
</compile_context>

<pallas_src>
import jax
import jax.numpy as jnp
from jax.experimental import pallas as pl
from jax.experimental.pallas import tpu as pltpu

LANE = 128


def _round_up(x, m):
    return ((x + m - 1) // m) * m


def critic_adv_kernel(x_ref,
                      w1_ref, b1_ref,
                      w2_ref, b2_ref,
                      w3_ref, b3_ref,
                      w4_ref, b4_ref,
                      o_ref):
    """One batch tile.

    x_ref : (F_P, TILE_B)  compute dtype (features on sublanes, batch on lanes)
    wN_ref: (out_P, in_P)  compute dtype (PyTorch (out, in) layout, zero padded)
    bN_ref: (out_P, 1)     float32
    w4_ref: (MID_P, 1)     float32 value-head weights
    b4_ref: (1, 1)         float32 value-head bias
    o_ref : (1, TILE_B)    float32 (one value per batch row, lane-dense)
    """
    cdt = x_ref.dtype

    # Layer 1: Linear + ReLU (MXU matmul, f32 accumulate; bias/ReLU on VPU, f32).
    h = jnp.dot(w1_ref[...], x_ref[...], preferred_element_type=jnp.float32)
    h = jnp.maximum(h + b1_ref[...], 0.0)

    # Layer 2: Linear + ReLU.
    h = jnp.dot(w2_ref[...], h.astype(cdt), preferred_element_type=jnp.float32)
    h = jnp.maximum(h + b2_ref[...], 0.0)

    # Layer 3: Linear + ReLU.
    h = jnp.dot(w3_ref[...], h.astype(cdt), preferred_element_type=jnp.float32)
    h = jnp.maximum(h + b3_ref[...], 0.0)

    # Layer 4 (value head, out_dim = 1): VPU multiply + cross-sublane reduction
    # instead of a 1-wide MXU matmul.  Result is lane-dense (1, TILE_B).
    v = jnp.sum(h * w4_ref[...], axis=0, keepdims=True) + b4_ref[...]
    o_ref[...] = v.astype(o_ref.dtype)


def init_params(state_dim, mid_dim, key):
    """Synthetic init mirroring the PyTorch module's shapes (math layout).

    Layers 1-3: PyTorch-default-style uniform(-1/sqrt(fan_in), 1/sqrt(fan_in)).
    Layer 4:    orthogonal init (std=1.0) for a (1, mid_dim) weight == unit-norm
                row; bias constant 1e-6.
    Weights wN are (in, out); biases bN are (1, out); all float32.
    """
    ks = jax.random.split(key, 8)

    def lin(kw, kb, fan_in, fan_out):
        bound = 1.0 / jnp.sqrt(fan_in)
        w = jax.random.uniform(kw, (fan_in, fan_out), jnp.float32, -bound, bound)
        b = jax.random.uniform(kb, (1, fan_out), jnp.float32, -bound, bound)
        return w, b

    w1, b1 = lin(ks[0], ks[1], state_dim, mid_dim)
    w2, b2 = lin(ks[2], ks[3], mid_dim, mid_dim)
    w3, b3 = lin(ks[4], ks[5], mid_dim, mid_dim)

    v = jax.random.normal(ks[6], (mid_dim, 1), jnp.float32)
    w4 = v / jnp.linalg.norm(v)                       # (mid_dim, 1), unit column
    b4 = jnp.full((1, 1), 1e-6, jnp.float32)

    return dict(w1=w1, b1=b1, w2=w2, b2=b2, w3=w3, b3=b3, w4=w4, b4=b4)


def prepare_params(params, compute_dtype=jnp.bfloat16):
    """Pad feature dims to multiples of 128 and lay weights out as (out, in).

    Matmul operands (w1..w3) are cast to `compute_dtype`; biases and the value
    head stay float32 (elementwise path).  Zero padding is exact.
    """
    state_dim, mid_dim = params["w1"].shape
    f_p = _round_up(state_dim, LANE)
    m_p = _round_up(mid_dim, LANE)

    def wt(w, out_p, in_p):
        # (in, out) math layout -> transposed + zero-padded (out_p, in_p).
        wt_ = jnp.zeros((out_p, in_p), jnp.float32)
        wt_ = wt_.at[:w.shape[1], :w.shape[0]].set(w.T)
        return wt_.astype(compute_dtype)

    def bias(b, out_p):
        return jnp.zeros((out_p, 1), jnp.float32).at[:b.shape[1], 0].set(b[0])

    w4 = jnp.zeros((m_p, 1), jnp.float32).at[:mid_dim, :].set(params["w4"])
    return dict(
        w1=wt(params["w1"], m_p, f_p), b1=bias(params["b1"], m_p),
        w2=wt(params["w2"], m_p, m_p), b2=bias(params["b2"], m_p),
        w3=wt(params["w3"], m_p, m_p), b3=bias(params["b3"], m_p),
        w4=w4, b4=params["b4"].reshape(1, 1).astype(jnp.float32),
        dims=(state_dim, mid_dim, f_p, m_p),
    )


def critic_adv_forward(state, kp, *, tile_b=1024):
    """state: (B, state_dim) float32.  kp: output of prepare_params.  -> (B, 1) f32."""
    B, state_dim = state.shape
    _, _, f_p, m_p = kp["dims"]
    cdt = kp["w1"].dtype

    # Large lane-multiple batch tile (512-2048 preferred), clamped for tiny B.
    tile_b = max(LANE, _round_up(min(tile_b, _round_up(B, LANE)), LANE))
    b_pad = _round_up(B, tile_b)
    n_blocks = pl.cdiv(b_pad, tile_b)

    # Pad + cast + transpose so the batch dim sits on the lane axis.
    x_t = (jnp.zeros((b_pad, f_p), cdt)
           .at[:B, :state_dim].set(state.astype(cdt))).T            # (f_p, b_pad)

    def const(shape):  # resident operands: DMA'd once, constant block index
        return pl.BlockSpec(shape, lambda i: (0, 0))

    in_specs = [
        pl.BlockSpec((f_p, tile_b), lambda i: (0, i)),               # streamed x tile
        const(kp["w1"].shape), const(kp["b1"].shape),
        const(kp["w2"].shape), const(kp["b2"].shape),
        const(kp["w3"].shape), const(kp["b3"].shape),
        const(kp["w4"].shape), const(kp["b4"].shape),
    ]
    out_spec = pl.BlockSpec((1, tile_b), lambda i: (0, i))           # lane-dense values

    itemsize = jnp.dtype(cdt).itemsize
    weight_bytes = sum(int(kp[k].size) * jnp.dtype(kp[k].dtype).itemsize
                       for k in ("w1", "b1", "w2", "b2", "w3", "b3", "w4", "b4"))
    cost = pl.CostEstimate(
        flops=2 * b_pad * (m_p * f_p + 2 * m_p * m_p + m_p),
        transcendentals=0,
        bytes_accessed=b_pad * f_p * itemsize + weight_bytes + b_pad * 4,
    )

    out = pl.pallas_call(
        critic_adv_kernel,
        out_shape=jax.ShapeDtypeStruct((1, b_pad), jnp.float32),
        grid=(n_blocks,),
        in_specs=in_specs,
        out_specs=out_spec,
        compiler_params=pltpu.CompilerParams(
            dimension_semantics=("parallel",),        # shard batch tiles over TCs (v7x)
            vmem_limit_bytes=32 * 1024 * 1024,        # safe on v5e/v6e/v7x
        ),
        cost_estimate=cost,
    )(x_t, kp["w1"], kp["b1"], kp["w2"], kp["b2"],
      kp["w3"], kp["b3"], kp["w4"], kp["b4"])

    return out[0, :B].reshape(B, 1)


def reference_forward(state, p, compute_dtype=jnp.bfloat16):
    """Pure-JAX reference with the same bf16-operand / f32-accumulate recipe."""
    cdt = compute_dtype

    def lin(x, w, b):
        return jnp.dot(x.astype(cdt), w.astype(cdt),
                       preferred_element_type=jnp.float32) + b

    h = jnp.maximum(lin(state, p["w1"], p["b1"]), 0.0)
    h = jnp.maximum(lin(h, p["w2"], p["b2"]), 0.0)
    h = jnp.maximum(lin(h, p["w3"], p["b3"]), 0.0)
    # Value head in f32 elementwise, like the kernel.
    v = jnp.sum(h * p["w4"][:, 0][None, :], axis=-1, keepdims=True)
    return v + p["b4"]


if __name__ == "__main__":
    key = jax.random.PRNGKey(0)
    k_state, k_params = jax.random.split(key)

    B, state_dim, mid_dim = 8, 32, 64
    state = jax.random.normal(k_state, (B, state_dim), jnp.float32)
    params = init_params(state_dim, mid_dim, k_params)
    kparams = prepare_params(params)

    out = critic_adv_forward(state, kparams)
    out = jax.block_until_ready(out)

    ref = reference_forward(state, params)
    assert out.shape == (B, 1), out.shape
    assert jnp.allclose(out, ref, atol=2e-3, rtol=2e-3), (
        "mismatch vs JAX reference: max abs err "
        f"{float(jnp.max(jnp.abs(out - ref)))}")

    print("KERNEL_OK")
</pallas_src>

<mosaic_0001>
module attributes {stable_mosaic.version = 11 : i64} {
  func.func @critic_adv_kernel(%arg0: i32, %arg1: memref<128x128xbf16, #tpu.memory_space<vmem>>, %arg2: memref<128x128xbf16, #tpu.memory_space<vmem>>, %arg3: memref<128x1xf32, #tpu.memory_space<vmem>>, %arg4: memref<128x128xbf16, #tpu.memory_space<vmem>>, %arg5: memref<128x1xf32, #tpu.memory_space<vmem>>, %arg6: memref<128x128xbf16, #tpu.memory_space<vmem>>, %arg7: memref<128x1xf32, #tpu.memory_space<vmem>>, %arg8: memref<128x1xf32, #tpu.memory_space<vmem>>, %arg9: memref<1x1xf32, #tpu.memory_space<vmem>>, %arg10: memref<1x128xf32, #tpu.memory_space<vmem>>) attributes {dimension_semantics = [#tpu.dimension_semantics<parallel>], iteration_bounds = array<i64: 1>, scalar_prefetch = 0 : i64, scratch_operands = 0 : i64, tpu.core_type = #tpu.core_type<tc>, window_params = [{transform_indices = @transform_0, window_bounds = array<i64: 128, 128>}, {pipeline_mode = #tpu.pipeline_mode<synchronous>, transform_indices = @transform_1, window_bounds = array<i64: 128, 128>}, {pipeline_mode = #tpu.pipeline_mode<synchronous>, transform_indices = @transform_2, window_bounds = array<i64: 128, 1>}, {pipeline_mode = #tpu.pipeline_mode<synchronous>, transform_indices = @transform_3, window_bounds = array<i64: 128, 128>}, {pipeline_mode = #tpu.pipeline_mode<synchronous>, transform_indices = @transform_4, window_bounds = array<i64: 128, 1>}, {pipeline_mode = #tpu.pipeline_mode<synchronous>, transform_indices = @transform_5, window_bounds = array<i64: 128, 128>}, {pipeline_mode = #tpu.pipeline_mode<synchronous>, transform_indices = @transform_6, window_bounds = array<i64: 128, 1>}, {pipeline_mode = #tpu.pipeline_mode<synchronous>, transform_indices = @transform_7, window_bounds = array<i64: 128, 1>}, {pipeline_mode = #tpu.pipeline_mode<synchronous>, transform_indices = @transform_8, window_bounds = array<i64: 1, 1>}, {transform_indices = @transform_9, window_bounds = array<i64: 1, 128>}]} {
    %c0 = arith.constant 0 : index
    %c0_0 = arith.constant 0 : index
    %0 = vector.load %arg2[%c0, %c0_0] : memref<128x128xbf16, #tpu.memory_space<vmem>>, vector<128x128xbf16>
    %c0_1 = arith.constant 0 : index
    %c0_2 = arith.constant 0 : index
    %1 = vector.load %arg1[%c0_1, %c0_2] : memref<128x128xbf16, #tpu.memory_space<vmem>>, vector<128x128xbf16>
    %cst = arith.constant dense<0.000000e+00> : vector<128x128xf32>
    %2 = tpu.matmul %0, %1, %cst {dimension_numbers = #tpu.dot_dimension_numbers<[1], [0], [0], [1], [0, 0, 1, 1], [], []>} : vector<128x128xbf16>, vector<128x128xbf16>, vector<128x128xf32> -> vector<128x128xf32>
    %c0_3 = arith.constant 0 : index
    %c0_4 = arith.constant 0 : index
    %3 = vector.load %arg3[%c0_3, %c0_4] : memref<128x1xf32, #tpu.memory_space<vmem>>, vector<128x1xf32>
    %4 = vector.broadcast %3 : vector<128x1xf32> to vector<128x128xf32>
    %5 = arith.addf %2, %4 : vector<128x128xf32>
    %cst_5 = arith.constant 0.000000e+00 : f32
    %6 = vector.broadcast %cst_5 : f32 to vector<128x128xf32>
    %7 = arith.maximumf %5, %6 : vector<128x128xf32>
    %c0_6 = arith.constant 0 : index
    %c0_7 = arith.constant 0 : index
    %8 = vector.load %arg4[%c0_6, %c0_7] : memref<128x128xbf16, #tpu.memory_space<vmem>>, vector<128x128xbf16>
    %9 = arith.truncf %7 : vector<128x128xf32> to vector<128x128xbf16>
    %cst_8 = arith.constant dense<0.000000e+00> : vector<128x128xf32>
    %10 = tpu.matmul %8, %9, %cst_8 {dimension_numbers = #tpu.dot_dimension_numbers<[1], [0], [0], [1], [0, 0, 1, 1], [], []>} : vector<128x128xbf16>, vector<128x128xbf16>, vector<128x128xf32> -> vector<128x128xf32>
    %c0_9 = arith.constant 0 : index
    %c0_10 = arith.constant 0 : index
    %11 = vector.load %arg5[%c0_9, %c0_10] : memref<128x1xf32, #tpu.memory_space<vmem>>, vector<128x1xf32>
    %12 = vector.broadcast %11 : vector<128x1xf32> to vector<128x128xf32>
    %13 = arith.addf %10, %12 : vector<128x128xf32>
    %cst_11 = arith.constant 0.000000e+00 : f32
    %14 = vector.broadcast %cst_11 : f32 to vector<128x128xf32>
    %15 = arith.maximumf %13, %14 : vector<128x128xf32>
    %c0_12 = arith.constant 0 : index
    %c0_13 = arith.constant 0 : index
    %16 = vector.load %arg6[%c0_12, %c0_13] : memref<128x128xbf16, #tpu.memory_space<vmem>>, vector<128x128xbf16>
    %17 = arith.truncf %15 : vector<128x128xf32> to vector<128x128xbf16>
    %cst_14 = arith.constant dense<0.000000e+00> : vector<128x128xf32>
    %18 = tpu.matmul %16, %17, %cst_14 {dimension_numbers = #tpu.dot_dimension_numbers<[1], [0], [0], [1], [0, 0, 1, 1], [], []>} : vector<128x128xbf16>, vector<128x128xbf16>, vector<128x128xf32> -> vector<128x128xf32>
    %c0_15 = arith.constant 0 : index
    %c0_16 = arith.constant 0 : index
    %19 = vector.load %arg7[%c0_15, %c0_16] : memref<128x1xf32, #tpu.memory_space<vmem>>, vector<128x1xf32>
    %20 = vector.broadcast %19 : vector<128x1xf32> to vector<128x128xf32>
    %21 = arith.addf %18, %20 : vector<128x128xf32>
    %cst_17 = arith.constant 0.000000e+00 : f32
    %22 = vector.broadcast %cst_17 : f32 to vector<128x128xf32>
    %23 = arith.maximumf %21, %22 : vector<128x128xf32>
    %c0_18 = arith.constant 0 : index
    %c0_19 = arith.constant 0 : index
    %24 = vector.load %arg8[%c0_18, %c0_19] : memref<128x1xf32, #tpu.memory_space<vmem>>, vector<128x1xf32>
    %25 = vector.broadcast %24 : vector<128x1xf32> to vector<128x128xf32>
    %26 = arith.mulf %23, %25 : vector<128x128xf32>
    %cst_20 = arith.constant dense<0.000000e+00> : vector<128xf32>
    %27 = vector.multi_reduction <add>, %26, %cst_20 [0] : vector<128x128xf32> to vector<128xf32>
    %28 = vector.shape_cast %27 : vector<128xf32> to vector<1x128xf32>
    %c0_21 = arith.constant 0 : index
    %c0_22 = arith.constant 0 : index
    %29 = vector.load %arg9[%c0_21, %c0_22] : memref<1x1xf32, #tpu.memory_space<vmem>>, vector<1x1xf32>
    %30 = vector.broadcast %29 : vector<1x1xf32> to vector<1x128xf32>
    %31 = arith.addf %28, %30 : vector<1x128xf32>
    %c0_23 = arith.constant 0 : index
    %c0_24 = arith.constant 0 : index
    %32 = vector.load %arg10[%c0_23, %c0_24] : memref<1x128xf32, #tpu.memory_space<vmem>>, vector<1x128xf32>
    tpu.vector_store %arg10[%c0_23, %c0_24], %31 {strides = array<i32>} : memref<1x128xf32, #tpu.memory_space<vmem>>, vector<1x128xf32>,
    return
  }
  func.func @transform_0(%arg0: i32) -> (i32, i32) {
    %c0_i32 = arith.constant 0 : i32
    %c0_i32_0 = arith.constant 0 : i32
    return %c0_i32, %arg0 : i32, i32
  }
  func.func @transform_1(%arg0: i32) -> (i32, i32) {
    %c0_i32 = arith.constant 0 : i32
    %c0_i32_0 = arith.constant 0 : i32
    %c0_i32_1 = arith.constant 0 : i32
    return %c0_i32, %c0_i32_0 : i32, i32
  }
  func.func @transform_2(%arg0: i32) -> (i32, i32) {
    %c0_i32 = arith.constant 0 : i32
    %c0_i32_0 = arith.constant 0 : i32
    %c0_i32_1 = arith.constant 0 : i32
    return %c0_i32, %c0_i32_0 : i32, i32
  }
  func.func @transform_3(%arg0: i32) -> (i32, i32) {
    %c0_i32 = arith.constant 0 : i32
    %c0_i32_0 = arith.constant 0 : i32
    %c0_i32_1 = arith.constant 0 : i32
    return %c0_i32, %c0_i32_0 : i32, i32
  }
  func.func @transform_4(%arg0: i32) -> (i32, i32) {
    %c0_i32 = arith.constant 0 : i32
    %c0_i32_0 = arith.constant 0 : i32
    %c0_i32_1 = arith.constant 0 : i32
    return %c0_i32, %c0_i32_0 : i32, i32
  }
  func.func @transform_5(%arg0: i32) -> (i32, i32) {
    %c0_i32 = arith.constant 0 : i32
    %c0_i32_0 = arith.constant 0 : i32
    %c0_i32_1 = arith.constant 0 : i32
    return %c0_i32, %c0_i32_0 : i32, i32
  }
  func.func @transform_6(%arg0: i32) -> (i32, i32) {
    %c0_i32 = arith.constant 0 : i32
    %c0_i32_0 = arith.constant 0 : i32
    %c0_i32_1 = arith.constant 0 : i32
    return %c0_i32, %c0_i32_0 : i32, i32
  }
  func.func @transform_7(%arg0: i32) -> (i32, i32) {
    %c0_i32 = arith.constant 0 : i32
    %c0_i32_0 = arith.constant 0 : i32
    %c0_i32_1 = arith.constant 0 : i32
    return %c0_i32, %c0_i32_0 : i32, i32
  }
  func.func @transform_8(%arg0: i32) -> (i32, i32) {
    %c0_i32 = arith.constant 0 : i32
    %c0_i32_0 = arith.constant 0 : i32
    %c0_i32_1 = arith.constant 0 : i32
    return %c0_i32, %c0_i32_0 : i32, i32
  }
  func.func @transform_9(%arg0: i32) -> (i32, i32) {
    %c0_i32 = arith.constant 0 : i32
    %c0_i32_0 = arith.constant 0 : i32
    return %c0_i32, %arg0 : i32, i32
  }
}

</mosaic_0001>

<llo_original>
// kernel: tpu_custom_call.1
$region0: #{tpu_custom_call.1}
  #allocation0 [shape = 'u32[]', space=smem, size = 0x4, offset = 0x4, fixed_abs, tag = 'smem constant byte address 0x4 - core index']
  #allocation1 [shape = 'u32[144,128]{1,0:T(1,128)}', space=vmem, size = 0x12000, scoped, tag = 'internal scratch']
  #allocation2 [shape = 'f32[1,1]{1,0:T(1,128)S(1)}', space=vmem, size = 0x200, scoped, tag = 'scoped memory for tpu_custom_call.1']
  %s0 = inlined_call_operand.vmem [shape: bf16[128,128], index: 0, kind: input, shape index: {}]
  %s1 = inlined_call_operand.vmem [shape: bf16[128,128], index: 1, kind: input, shape index: {}]
  %s2 = inlined_call_operand.vmem [shape: f32[128,1], index: 2, kind: input, shape index: {}]
  %s3 = inlined_call_operand.vmem [shape: bf16[128,128], index: 3, kind: input, shape index: {}]
  %s4 = inlined_call_operand.vmem [shape: f32[128,1], index: 4, kind: input, shape index: {}]
  %s5 = inlined_call_operand.vmem [shape: bf16[128,128], index: 5, kind: input, shape index: {}]
  %s6 = inlined_call_operand.vmem [shape: f32[128,1], index: 6, kind: input, shape index: {}]
  %s7 = inlined_call_operand.vmem [shape: f32[128,1], index: 7, kind: input, shape index: {}]
  %s8 = inlined_call_operand.<no memory space> [shape: f32[1,1], index: 8, kind: input, shape index: {}]
  %s9 = inlined_call_operand.hbm [shape: f32[1,128], index: 9, kind: output, shape index: {}]
  %s10 = sld [smem:[#allocation0]]
  $region46: #{tpu_custom_call.1} parent=0
    _
  %s12 = ssub.s32 1, %s10
  %s13 = scalar_select 0, %s12, %s10
  %v14 = vstv %s8
  %15 = vst [vmem:[#allocation2] sm:$0x1] %v14
  $region1: #{tpu_custom_call.1} parent=0
    #allocation3 [shape = 'u8[512]{0}', space=vmem, size = 0x400, scoped, tag = 'output window, operand 0, single buffered']
    #allocation4 [shape = 's32[1]{0}', space=sflag, size = 0x4, scoped, tag = 'scoped memory for tpu_custom_call.1']
    %16 = vsyncpa [#allocation4], 0
    // Predicated region
    $region2: #{tpu_custom_call.1} parent=1 // pred_check
      _
    $region3: #{tpu_custom_call.1} parent=1 // pred_check_branch
      %18 = sbr.rel (0) target = $region5
    $region4: #{tpu_custom_call.1} parent=1 // pred_region
      _
    $region5: #{tpu_custom_call.1} parent=1 // pred_fallthru
      _
    // Predicated region
    $region6: #{tpu_custom_call.1} parent=1 // pred_check
      _
    $region7: #{tpu_custom_call.1} parent=1 // pred_check_branch
      %20 = sbr.rel (0) target = $region9
    $region8: #{tpu_custom_call.1} parent=1 // pred_region
      _
    $region9: #{tpu_custom_call.1} parent=1 // pred_fallthru
      _
    // Predicated region
    $region10: #{tpu_custom_call.1} parent=1 // pred_check
      _
    $region11: #{tpu_custom_call.1} parent=1 // pred_check_branch
      %22 = sbr.rel (0) target = $region13
    $region12: #{tpu_custom_call.1} parent=1 // pred_region
      _
    $region13: #{tpu_custom_call.1} parent=1 // pred_fallthru
      _
    // Predicated region
    $region14: #{tpu_custom_call.1} parent=1 // pred_check
      _
    $region15: #{tpu_custom_call.1} parent=1 // pred_check_branch
      %24 = sbr.rel (0) target = $region17
    $region16: #{tpu_custom_call.1} parent=1 // pred_region
      _
    $region17: #{tpu_custom_call.1} parent=1 // pred_fallthru
      _
    // Predicated region
    $region18: #{tpu_custom_call.1} parent=1 // pred_check
      _
    $region19: #{tpu_custom_call.1} parent=1 // pred_check_branch
      %26 = sbr.rel (0) target = $region21
    $region20: #{tpu_custom_call.1} parent=1 // pred_region
      _
    $region21: #{tpu_custom_call.1} parent=1 // pred_fallthru
      _
    // Predicated region
    $region22: #{tpu_custom_call.1} parent=1 // pred_check
      _
    $region23: #{tpu_custom_call.1} parent=1 // pred_check_branch
      %28 = sbr.rel (0) target = $region25
    $region24: #{tpu_custom_call.1} parent=1 // pred_region
      _
    $region25: #{tpu_custom_call.1} parent=1 // pred_fallthru
      _
    // Predicated region
    $region26: #{tpu_custom_call.1} parent=1 // pred_check
      _
    $region27: #{tpu_custom_call.1} parent=1 // pred_check_branch
      %30 = sbr.rel (0) target = $region29
    $region28: #{tpu_custom_call.1} parent=1 // pred_region
      _
    $region29: #{tpu_custom_call.1} parent=1 // pred_fallthru
      _
    // Predicated region
    $region30: #{tpu_custom_call.1} parent=1 // pred_check
      _
    $region31: #{tpu_custom_call.1} parent=1 // pred_check_branch
      %32 = sbr.rel (0) target = $region33
    $region32: #{tpu_custom_call.1} parent=1 // pred_region
      _
    $region33: #{tpu_custom_call.1} parent=1 // pred_fallthru
      _
    // Predicated region
    $region34: #{tpu_custom_call.1} parent=1 // pred_check
      _
    $region35: #{tpu_custom_call.1} parent=1 // pred_check_branch
      %34 = sbr.rel (0) target = $region37
    $region36: #{tpu_custom_call.1} parent=1 // pred_region
      _
    $region37: #{tpu_custom_call.1} parent=1 // pred_fallthru
      _
    %v36 = vld [vmem:[%s1] sm:$0xf]
    %v37 = vld [vmem:[%s1 + $0x4] sm:$0xf]
    %v38 = vld [vmem:[%s1 + $0x8] sm:$0xf]
    %v39 = vld [vmem:[%s1 + $0xc] sm:$0xf]
    %v40 = vld [vmem:[%s1 + $0x10] sm:$0xf]
    %v41 = vld [vmem:[%s1 + $0x14] sm:$0xf]
    %v42 = vld [vmem:[%s1 + $0x18] sm:$0xf]
    %v43 = vld [vmem:[%s1 + $0x1c] sm:$0xf]
    %v44 = vld [vmem:[%s1 + $0x20] sm:$0xf]
    %v45 = vld [vmem:[%s1 + $0x24] sm:$0xf]
    %v46 = vld [vmem:[%s1 + $0x28] sm:$0xf]
    %v47 = vld [vmem:[%s1 + $0x2c] sm:$0xf]
    %v48 = vld [vmem:[%s1 + $0x30] sm:$0xf]
    %v49 = vld [vmem:[%s1 + $0x34] sm:$0xf]
    %v50 = vld [vmem:[%s1 + $0x38] sm:$0xf]
    %v51 = vld [vmem:[%s1 + $0x3c] sm:$0xf]
    %v52 = vld [vmem:[%s0] sm:$0xf]
    %v53 = vld [vmem:[%s0 + $0x4] sm:$0xf]
    %v54 = vld [vmem:[%s0 + $0x8] sm:$0xf]
    %v55 = vld [vmem:[%s0 + $0xc] sm:$0xf]
    %v56 = vld [vmem:[%s0 + $0x10] sm:$0xf]
    %v57 = vld [vmem:[%s0 + $0x14] sm:$0xf]
    %v58 = vld [vmem:[%s0 + $0x18] sm:$0xf]
    %v59 = vld [vmem:[%s0 + $0x1c] sm:$0xf]
    %v60 = vld [vmem:[%s0 + $0x20] sm:$0xf]
    %v61 = vld [vmem:[%s0 + $0x24] sm:$0xf]
    %v62 = vld [vmem:[%s0 + $0x28] sm:$0xf]
    %v63 = vld [vmem:[%s0 + $0x2c] sm:$0xf]
    %v64 = vld [vmem:[%s0 + $0x30] sm:$0xf]
    %v65 = vld [vmem:[%s0 + $0x34] sm:$0xf]
    %v66 = vld [vmem:[%s0 + $0x38] sm:$0xf]
    %v67 = vld [vmem:[%s0 + $0x3c] sm:$0xf]
    %v68 = vld [vmem:[%s2] sm:$0xff]
    %v69 = vld [vmem:[%s2 + $0x8] sm:$0xff]
    %v70 = vld [vmem:[%s2 + $0x10] sm:$0xff]
    %v71 = vld [vmem:[%s2 + $0x18] sm:$0xff]
    %v72 = vld [vmem:[%s2 + $0x20] sm:$0xff]
    %v73 = vld [vmem:[%s2 + $0x28] sm:$0xff]
    %v74 = vld [vmem:[%s2 + $0x30] sm:$0xff]
    %v75 = vld [vmem:[%s2 + $0x38] sm:$0xff]
    %v76 = vld [vmem:[%s2 + $0x40] sm:$0xff]
    %v77 = vld [vmem:[%s2 + $0x48] sm:$0xff]
    %v78 = vld [vmem:[%s2 + $0x50] sm:$0xff]
    %v79 = vld [vmem:[%s2 + $0x58] sm:$0xff]
    %v80 = vld [vmem:[%s2 + $0x60] sm:$0xff]
    %v81 = vld [vmem:[%s2 + $0x68] sm:$0xff]
    %v82 = vld [vmem:[%s2 + $0x70] sm:$0xff]
    %v83 = vld [vmem:[%s2 + $0x78] sm:$0xff]
    %85 = vset.pattern.permute.xlu0 0
    %86 = vperm.xlu0 %85, %v68
    %v87 = vpop.permute.xlu0 %86
    %90 = vset.pattern.permute.xlu0 0
    %91 = vperm.xlu0 %90, %v69
    %v92 = vpop.permute.xlu0 %91
    %95 = vset.pattern.permute.xlu0 0
    %96 = vperm.xlu0 %95, %v70
    %v97 = vpop.permute.xlu0 %96
    %100 = vset.pattern.permute.xlu0 0
    %101 = vperm.xlu0 %100, %v71
    %v102 = vpop.permute.xlu0 %101
    %105 = vset.pattern.permute.xlu0 0
    %106 = vperm.xlu0 %105, %v72
    %v107 = vpop.permute.xlu0 %106
    %110 = vset.pattern.permute.xlu0 0
    %111 = vperm.xlu0 %110, %v73
    %v112 = vpop.permute.xlu0 %111
    %115 = vset.pattern.permute.xlu0 0
    %116 = vperm.xlu0 %115, %v74
    %v117 = vpop.permute.xlu0 %116
    %120 = vset.pattern.permute.xlu0 0
    %121 = vperm.xlu0 %120, %v75
    %v122 = vpop.permute.xlu0 %121
    %125 = vset.pattern.permute.xlu0 0
    %126 = vperm.xlu0 %125, %v76
    %v127 = vpop.permute.xlu0 %126
    %130 = vset.pattern.permute.xlu0 0
    %131 = vperm.xlu0 %130, %v77
    %v132 = vpop.permute.xlu0 %131
    %135 = vset.pattern.permute.xlu0 0
    %136 = vperm.xlu0 %135, %v78
    %v137 = vpop.permute.xlu0 %136
    %140 = vset.pattern.permute.xlu0 0
    %141 = vperm.xlu0 %140, %v79
    %v142 = vpop.permute.xlu0 %141
    %145 = vset.pattern.permute.xlu0 0
    %146 = vperm.xlu0 %145, %v80
    %v147 = vpop.permute.xlu0 %146
    %150 = vset.pattern.permute.xlu0 0
    %151 = vperm.xlu0 %150, %v81
    %v152 = vpop.permute.xlu0 %151
    %155 = vset.pattern.permute.xlu0 0
    %156 = vperm.xlu0 %155, %v82
    %v157 = vpop.permute.xlu0 %156
    %160 = vset.pattern.permute.xlu0 0
    %161 = vperm.xlu0 %160, %v83
    %v162 = vpop.permute.xlu0 %161
    %v180 = vunpack.c.l.b16 %v36
    %v181 = vunpack.c.l.b16 %v37
    %v182 = vunpack.c.l.b16 %v38
    %v183 = vunpack.c.l.b16 %v39
    %v184 = vunpack.c.l.b16 %v40
    %v185 = vunpack.c.l.b16 %v41
    %v186 = vunpack.c.l.b16 %v42
    %v187 = vunpack.c.l.b16 %v43
    %v188 = vunpack.c.l.b16 %v44
    %v189 = vunpack.c.l.b16 %v45
    %v190 = vunpack.c.l.b16 %v46
    %v191 = vunpack.c.l.b16 %v47
    %v192 = vunpack.c.l.b16 %v48
    %v193 = vunpack.c.l.b16 %v49
    %v194 = vunpack.c.l.b16 %v50
    %v195 = vunpack.c.l.b16 %v51
    %v196 = vpack.c.b16 %v181, %v180
    %v197 = vpack.c.b16 %v183, %v182
    %v198 = vpack.c.b16 %v185, %v184
    %v199 = vpack.c.b16 %v187, %v186
    %v200 = vpack.c.b16 %v189, %v188
    %v201 = vpack.c.b16 %v191, %v190
    %v202 = vpack.c.b16 %v193, %v192
    %v203 = vpack.c.b16 %v195, %v194
    %v228 = vunpack.c.l.b16 %v52
    %v229 = vunpack.c.l.b16 %v53
    %v230 = vunpack.c.l.b16 %v54
    %v231 = vunpack.c.l.b16 %v55
    %v232 = vunpack.c.l.b16 %v56
    %v233 = vunpack.c.l.b16 %v57
    %v234 = vunpack.c.l.b16 %v58
    %v235 = vunpack.c.l.b16 %v59
    %v236 = vunpack.c.l.b16 %v60
    %v237 = vunpack.c.l.b16 %v61
    %v238 = vunpack.c.l.b16 %v62
    %v239 = vunpack.c.l.b16 %v63
    %v240 = vunpack.c.l.b16 %v64
    %v241 = vunpack.c.l.b16 %v65
    %v242 = vunpack.c.l.b16 %v66
    %v243 = vunpack.c.l.b16 %v67
    %v244 = vpack.c.b16 %v229, %v228
    %v245 = vpack.c.b16 %v231, %v230
    %v246 = vpack.c.b16 %v233, %v232
    %v247 = vpack.c.b16 %v235, %v234
    %v248 = vpack.c.b16 %v237, %v236
    %v249 = vpack.c.b16 %v239, %v238
    %v250 = vpack.c.b16 %v241, %v240
    %v251 = vpack.c.b16 %v243, %v242
    %260 = vmatprep.subr.bf16.mxu0 0
    %261 = vmatpush1.bf16.msra.mxu0 %v244
    %262 = vmatprep.subr.bf16.mxu0 0
    %263 = vmatpush1.bf16.msra.mxu0 %v245
    %264 = vmatprep.subr.bf16.mxu0 0
    %265 = vmatpush1.bf16.msra.mxu0 %v246
    %266 = vmatprep.subr.bf16.mxu0 0
    %267 = vmatpush1.bf16.msra.mxu0 %v247
    %268 = vmatprep.subr.bf16.mxu0 0
    %269 = vmatpush1.bf16.msra.mxu0 %v248
    %270 = vmatprep.subr.bf16.mxu0 0
    %271 = vmatpush1.bf16.msra.mxu0 %v249
    %272 = vmatprep.subr.bf16.mxu0 0
    %273 = vmatpush1.bf16.msra.mxu0 %v250
    %274 = vmatprep.subr.bf16.mxu0 0
    %275 = vmatpush1.bf16.msra.mxu0 %v251
    %276 = vmatprep.subr.bf16.mxu0 0
    %277 = vmatpush1.bf16.msra.mxu0 0
    %278 = vmatprep.subr.bf16.mxu0 0
    %279 = vmatpush1.bf16.msra.mxu0 0
    %280 = vmatprep.subr.bf16.mxu0 0
    %281 = vmatpush1.bf16.msra.mxu0 0
    %282 = vmatprep.subr.bf16.mxu0 0
    %283 = vmatpush1.bf16.msra.mxu0 0
    %284 = vmatprep.subr.bf16.mxu0 0
    %285 = vmatpush1.bf16.msra.mxu0 0
    %286 = vmatprep.subr.bf16.mxu0 0
    %287 = vmatpush1.bf16.msra.mxu0 0
    %288 = vmatprep.subr.bf16.mxu0 0
    %289 = vmatpush1.bf16.msra.mxu0 0
    %290 = vmatprep.subr.bf16.mxu0 0
    %291 = vmatpush1.bf16.msra.mxu0 0
    %292 = vmatprep.mubr.bf16.mxu0 0
    %293 = vmatmul.mubr.bf16.gmra.mrb[0].mxu0 %v196
    %v294 = vpop.f32.mrb[0].mxu0
    %v295 = vadd.f32 %v87, %v294
    %v296 = vpop.f32.mrb[0].mxu0
    %v297 = vpop.f32.mrb[0].mxu0
    %v298 = vadd.f32 %v92, %v297
    %v299 = vpop.f32.mrb[0].mxu0
    %300 = vmatprep.mubr.bf16.mxu0 0
    %301 = vmatmul.mubr.bf16.gmra.mrb[0].mxu0 %v197
    %v302 = vpop.f32.mrb[0].mxu0
    %v303 = vadd.f32 %v97, %v302
    %v304 = vpop.f32.mrb[0].mxu0
    %v305 = vpop.f32.mrb[0].mxu0
    %v306 = vadd.f32 %v102, %v305
    %v307 = vpop.f32.mrb[0].mxu0
    %308 = vmatprep.mubr.bf16.mxu0 0
    %309 = vmatmul.mubr.bf16.gmra.mrb[0].mxu0 %v198
    %v310 = vpop.f32.mrb[0].mxu0
    %v311 = vadd.f32 %v107, %v310
    %v312 = vpop.f32.mrb[0].mxu0
    %v313 = vpop.f32.mrb[0].mxu0
    %v314 = vadd.f32 %v112, %v313
    %v315 = vpop.f32.mrb[0].mxu0
    %316 = vmatprep.mubr.bf16.mxu0 0
    %317 = vmatmul.mubr.bf16.gmra.mrb[0].mxu0 %v199
    %v318 = vpop.f32.mrb[0].mxu0
    %v319 = vadd.f32 %v117, %v318
    %v320 = vpop.f32.mrb[0].mxu0
    %v321 = vpop.f32.mrb[0].mxu0
    %v322 = vadd.f32 %v122, %v321
    %v323 = vpop.f32.mrb[0].mxu0
    %324 = vmatprep.mubr.bf16.mxu0 0
    %325 = vmatmul.mubr.bf16.gmra.mrb[0].mxu0 %v200
    %v326 = vpop.f32.mrb[0].mxu0
    %v327 = vadd.f32 %v127, %v326
    %v328 = vpop.f32.mrb[0].mxu0
    %v329 = vpop.f32.mrb[0].mxu0
    %v330 = vadd.f32 %v132, %v329
    %v331 = vpop.f32.mrb[0].mxu0
    %332 = vmatprep.mubr.bf16.mxu0 0
    %333 = vmatmul.mubr.bf16.gmra.mrb[0].mxu0 %v201
    %v334 = vpop.f32.mrb[0].mxu0
    %v335 = vadd.f32 %v137, %v334
    %v336 = vpop.f32.mrb[0].mxu0
    %v337 = vpop.f32.mrb[0].mxu0
    %v338 = vadd.f32 %v142, %v337
    %v339 = vpop.f32.mrb[0].mxu0
    %340 = vmatprep.mubr.bf16.mxu0 0
    %341 = vmatmul.mubr.bf16.gmra.mrb[0].mxu0 %v202
    %v342 = vpop.f32.mrb[0].mxu0
    %v343 = vadd.f32 %v147, %v342
    %v344 = vpop.f32.mrb[0].mxu0
    %v345 = vpop.f32.mrb[0].mxu0
    %v346 = vadd.f32 %v152, %v345
    %v347 = vpop.f32.mrb[0].mxu0
    %348 = vmatprep.mubr.bf16.mxu0 0
    %349 = vmatmul.mubr.bf16.gmra.mrb[0].mxu0 %v203
    %v350 = vpop.f32.mrb[0].mxu0
    %v351 = vadd.f32 %v157, %v350
    %v352 = vpop.f32.mrb[0].mxu0
    %v353 = vpop.f32.mrb[0].mxu0
    %v354 = vadd.f32 %v162, %v353
    %v355 = vpop.f32.mrb[0].mxu0
    %356 = vdwg.mxu0
    %v357 = vmax.f32 %v295, 0.0
    %v358 = vmax.f32 %v298, 0.0
    %v359 = vmax.f32 %v303, 0.0
    %v360 = vmax.f32 %v306, 0.0
    %v361 = vmax.f32 %v311, 0.0
    %v362 = vmax.f32 %v314, 0.0
    %v363 = vmax.f32 %v319, 0.0
    %v364 = vmax.f32 %v322, 0.0
    %v365 = vmax.f32 %v327, 0.0
    %v366 = vmax.f32 %v330, 0.0
    %v367 = vmax.f32 %v335, 0.0
    %v368 = vmax.f32 %v338, 0.0
    %v369 = vmax.f32 %v343, 0.0
    %v370 = vmax.f32 %v346, 0.0
    %v371 = vmax.f32 %v351, 0.0
    %v372 = vmax.f32 %v354, 0.0
    %v373 = vld [vmem:[%s3] sm:$0xf]
    %v374 = vld [vmem:[%s3 + $0x4] sm:$0xf]
    %v375 = vld [vmem:[%s3 + $0x8] sm:$0xf]
    %v376 = vld [vmem:[%s3 + $0xc] sm:$0xf]
    %v377 = vld [vmem:[%s3 + $0x10] sm:$0xf]
    %v378 = vld [vmem:[%s3 + $0x14] sm:$0xf]
    %v379 = vld [vmem:[%s3 + $0x18] sm:$0xf]
    %v380 = vld [vmem:[%s3 + $0x1c] sm:$0xf]
    %v381 = vld [vmem:[%s3 + $0x20] sm:$0xf]
    %v382 = vld [vmem:[%s3 + $0x24] sm:$0xf]
    %v383 = vld [vmem:[%s3 + $0x28] sm:$0xf]
    %v384 = vld [vmem:[%s3 + $0x2c] sm:$0xf]
    %v385 = vld [vmem:[%s3 + $0x30] sm:$0xf]
    %v386 = vld [vmem:[%s3 + $0x34] sm:$0xf]
    %v387 = vld [vmem:[%s3 + $0x38] sm:$0xf]
    %v388 = vld [vmem:[%s3 + $0x3c] sm:$0xf]
    %v389 = vpack.c.bf16 %v358, %v357
    %v390 = vpack.c.bf16 %v360, %v359
    %v391 = vpack.c.bf16 %v362, %v361
    %v392 = vpack.c.bf16 %v364, %v363
    %v393 = vpack.c.bf16 %v366, %v365
    %v394 = vpack.c.bf16 %v368, %v367
    %v395 = vpack.c.bf16 %v370, %v369
    %v396 = vpack.c.bf16 %v372, %v371
    %v397 = vld [vmem:[%s4] sm:$0xff]
    %v398 = vld [vmem:[%s4 + $0x8] sm:$0xff]
    %v399 = vld [vmem:[%s4 + $0x10] sm:$0xff]
    %v400 = vld [vmem:[%s4 + $0x18] sm:$0xff]
    %v401 = vld [vmem:[%s4 + $0x20] sm:$0xff]
    %v402 = vld [vmem:[%s4 + $0x28] sm:$0xff]
    %v403 = vld [vmem:[%s4 + $0x30] sm:$0xff]
    %v404 = vld [vmem:[%s4 + $0x38] sm:$0xff]
    %v405 = vld [vmem:[%s4 + $0x40] sm:$0xff]
    %v406 = vld [vmem:[%s4 + $0x48] sm:$0xff]
    %v407 = vld [vmem:[%s4 + $0x50] sm:$0xff]
    %v408 = vld [vmem:[%s4 + $0x58] sm:$0xff]
    %v409 = vld [vmem:[%s4 + $0x60] sm:$0xff]
    %v410 = vld [vmem:[%s4 + $0x68] sm:$0xff]
    %v411 = vld [vmem:[%s4 + $0x70] sm:$0xff]
    %v412 = vld [vmem:[%s4 + $0x78] sm:$0xff]
    %414 = vset.pattern.permute.xlu0 0
    %415 = vperm.xlu0 %414, %v397
    %v416 = vpop.permute.xlu0 %415
    %419 = vset.pattern.permute.xlu0 0
    %420 = vperm.xlu0 %419, %v398
    %v421 = vpop.permute.xlu0 %420
    %424 = vset.pattern.permute.xlu0 0
    %425 = vperm.xlu0 %424, %v399
    %v426 = vpop.permute.xlu0 %425
    %429 = vset.pattern.permute.xlu0 0
    %430 = vperm.xlu0 %429, %v400
    %v431 = vpop.permute.xlu0 %430
    %434 = vset.pattern.permute.xlu0 0
    %435 = vperm.xlu0 %434, %v401
    %v436 = vpop.permute.xlu0 %435
    %439 = vset.pattern.permute.xlu0 0
    %440 = vperm.xlu0 %439, %v402
    %v441 = vpop.permute.xlu0 %440
    %444 = vset.pattern.permute.xlu0 0
    %445 = vperm.xlu0 %444, %v403
    %v446 = vpop.permute.xlu0 %445
    %449 = vset.pattern.permute.xlu0 0
    %450 = vperm.xlu0 %449, %v404
    %v451 = vpop.permute.xlu0 %450
    %454 = vset.pattern.permute.xlu0 0
    %455 = vperm.xlu0 %454, %v405
    %v456 = vpop.permute.xlu0 %455
    %459 = vset.pattern.permute.xlu0 0
    %460 = vperm.xlu0 %459, %v406
    %v461 = vpop.permute.xlu0 %460
    %464 = vset.pattern.permute.xlu0 0
    %465 = vperm.xlu0 %464, %v407
    %v466 = vpop.permute.xlu0 %465
    %469 = vset.pattern.permute.xlu0 0
    %470 = vperm.xlu0 %469, %v408
    %v471 = vpop.permute.xlu0 %470
    %474 = vset.pattern.permute.xlu0 0
    %475 = vperm.xlu0 %474, %v409
    %v476 = vpop.permute.xlu0 %475
    %479 = vset.pattern.permute.xlu0 0
    %480 = vperm.xlu0 %479, %v410
    %v481 = vpop.permute.xlu0 %480
    %484 = vset.pattern.permute.xlu0 0
    %485 = vperm.xlu0 %484, %v411
    %v486 = vpop.permute.xlu0 %485
    %489 = vset.pattern.permute.xlu0 0
    %490 = vperm.xlu0 %489, %v412
    %v491 = vpop.permute.xlu0 %490
    %v509 = vunpack.c.l.b16 %v373
    %v510 = vunpack.c.l.b16 %v374
    %v511 = vunpack.c.l.b16 %v375
    %v512 = vunpack.c.l.b16 %v376
    %v513 = vunpack.c.l.b16 %v377
    %v514 = vunpack.c.l.b16 %v378
    %v515 = vunpack.c.l.b16 %v379
    %v516 = vunpack.c.l.b16 %v380
    %v517 = vunpack.c.l.b16 %v381
    %v518 = vunpack.c.l.b16 %v382
    %v519 = vunpack.c.l.b16 %v383
    %v520 = vunpack.c.l.b16 %v384
    %v521 = vunpack.c.l.b16 %v385
    %v522 = vunpack.c.l.b16 %v386
    %v523 = vunpack.c.l.b16 %v387
    %v524 = vunpack.c.l.b16 %v388
    %v525 = vpack.c.b16 %v510, %v509
    %v526 = vpack.c.b16 %v512, %v511
    %v527 = vpack.c.b16 %v514, %v513
    %v528 = vpack.c.b16 %v516, %v515
    %v529 = vpack.c.b16 %v518, %v517
    %v530 = vpack.c.b16 %v520, %v519
    %v531 = vpack.c.b16 %v522, %v521
    %v532 = vpack.c.b16 %v524, %v523
    %541 = vmatprep.subr.bf16.mxu0 0
    %542 = vmatpush1.bf16.msra.mxu0 %v389
    %543 = vmatprep.subr.bf16.mxu0 0
    %544 = vmatpush1.bf16.msra.mxu0 %v390
    %545 = vmatprep.subr.bf16.mxu0 0
    %546 = vmatpush1.bf16.msra.mxu0 %v391
    %547 = vmatprep.subr.bf16.mxu0 0
    %548 = vmatpush1.bf16.msra.mxu0 %v392
    %549 = vmatprep.subr.bf16.mxu0 0
    %550 = vmatpush1.bf16.msra.mxu0 %v393
    %551 = vmatprep.subr.bf16.mxu0 0
    %552 = vmatpush1.bf16.msra.mxu0 %v394
    %553 = vmatprep.subr.bf16.mxu0 0
    %554 = vmatpush1.bf16.msra.mxu0 %v395
    %555 = vmatprep.subr.bf16.mxu0 0
    %556 = vmatpush1.bf16.msra.mxu0 %v396
    %557 = vmatprep.subr.bf16.mxu0 0
    %558 = vmatpush1.bf16.msra.mxu0 0
    %559 = vmatprep.subr.bf16.mxu0 0
    %560 = vmatpush1.bf16.msra.mxu0 0
    %561 = vmatprep.subr.bf16.mxu0 0
    %562 = vmatpush1.bf16.msra.mxu0 0
    %563 = vmatprep.subr.bf16.mxu0 0
    %564 = vmatpush1.bf16.msra.mxu0 0
    %565 = vmatprep.subr.bf16.mxu0 0
    %566 = vmatpush1.bf16.msra.mxu0 0
    %567 = vmatprep.subr.bf16.mxu0 0
    %568 = vmatpush1.bf16.msra.mxu0 0
    %569 = vmatprep.subr.bf16.mxu0 0
    %570 = vmatpush1.bf16.msra.mxu0 0
    %571 = vmatprep.subr.bf16.mxu0 0
    %572 = vmatpush1.bf16.msra.mxu0 0
    %573 = vmatprep.mubr.bf16.mxu0 0
    %574 = vmatmul.mubr.bf16.gmra.mrb[0].mxu0 %v525
    %v575 = vpop.f32.mrb[0].mxu0
    %v576 = vadd.f32 %v416, %v575
    %v577 = vpop.f32.mrb[0].mxu0
    %v578 = vpop.f32.mrb[0].mxu0
    %v579 = vadd.f32 %v421, %v578
    %v580 = vpop.f32.mrb[0].mxu0
    %581 = vmatprep.mubr.bf16.mxu0 0
    %582 = vmatmul.mubr.bf16.gmra.mrb[0].mxu0 %v526
    %v583 = vpop.f32.mrb[0].mxu0
    %v584 = vadd.f32 %v426, %v583
    %v585 = vpop.f32.mrb[0].mxu0
    %v586 = vpop.f32.mrb[0].mxu0
    %v587 = vadd.f32 %v431, %v586
    %v588 = vpop.f32.mrb[0].mxu0
    %589 = vmatprep.mubr.bf16.mxu0 0
    %590 = vmatmul.mubr.bf16.gmra.mrb[0].mxu0 %v527
    %v591 = vpop.f32.mrb[0].mxu0
    %v592 = vadd.f32 %v436, %v591
    %v593 = vpop.f32.mrb[0].mxu0
    %v594 = vpop.f32.mrb[0].mxu0
    %v595 = vadd.f32 %v441, %v594
    %v596 = vpop.f32.mrb[0].mxu0
    %597 = vmatprep.mubr.bf16.mxu0 0
    %598 = vmatmul.mubr.bf16.gmra.mrb[0].mxu0 %v528
    %v599 = vpop.f32.mrb[0].mxu0
    %v600 = vadd.f32 %v446, %v599
    %v601 = vpop.f32.mrb[0].mxu0
    %v602 = vpop.f32.mrb[0].mxu0
    %v603 = vadd.f32 %v451, %v602
    %v604 = vpop.f32.mrb[0].mxu0
    %605 = vmatprep.mubr.bf16.mxu0 0
    %606 = vmatmul.mubr.bf16.gmra.mrb[0].mxu0 %v529
    %v607 = vpop.f32.mrb[0].mxu0
    %v608 = vadd.f32 %v456, %v607
    %v609 = vpop.f32.mrb[0].mxu0
    %v610 = vpop.f32.mrb[0].mxu0
    %v611 = vadd.f32 %v461, %v610
    %v612 = vpop.f32.mrb[0].mxu0
    %613 = vmatprep.mubr.bf16.mxu0 0
    %614 = vmatmul.mubr.bf16.gmra.mrb[0].mxu0 %v530
    %v615 = vpop.f32.mrb[0].mxu0
    %v616 = vadd.f32 %v466, %v615
    %v617 = vpop.f32.mrb[0].mxu0
    %v618 = vpop.f32.mrb[0].mxu0
    %v619 = vadd.f32 %v471, %v618
    %v620 = vpop.f32.mrb[0].mxu0
    %621 = vmatprep.mubr.bf16.mxu0 0
    %622 = vmatmul.mubr.bf16.gmra.mrb[0].mxu0 %v531
    %v623 = vpop.f32.mrb[0].mxu0
    %v624 = vadd.f32 %v476, %v623
    %v625 = vpop.f32.mrb[0].mxu0
    %v626 = vpop.f32.mrb[0].mxu0
    %v627 = vadd.f32 %v481, %v626
    %v628 = vpop.f32.mrb[0].mxu0
    %629 = vmatprep.mubr.bf16.mxu0 0
    %630 = vmatmul.mubr.bf16.gmra.mrb[0].mxu0 %v532
    %v631 = vpop.f32.mrb[0].mxu0
    %v632 = vadd.f32 %v486, %v631
    %v633 = vpop.f32.mrb[0].mxu0
    %v634 = vpop.f32.mrb[0].mxu0
    %v635 = vadd.f32 %v491, %v634
    %v636 = vpop.f32.mrb[0].mxu0
    %637 = vdwg.mxu0
    %v638 = vmax.f32 %v576, 0.0
    %v639 = vmax.f32 %v579, 0.0
    %v640 = vmax.f32 %v584, 0.0
    %v641 = vmax.f32 %v587, 0.0
    %v642 = vmax.f32 %v592, 0.0
    %v643 = vmax.f32 %v595, 0.0
    %v644 = vmax.f32 %v600, 0.0
    %v645 = vmax.f32 %v603, 0.0
    %v646 = vmax.f32 %v608, 0.0
    %v647 = vmax.f32 %v611, 0.0
    %v648 = vmax.f32 %v616, 0.0
    %v649 = vmax.f32 %v619, 0.0
    %v650 = vmax.f32 %v624, 0.0
    %v651 = vmax.f32 %v627, 0.0
    %v652 = vmax.f32 %v632, 0.0
    %v653 = vmax.f32 %v635, 0.0
    %v654 = vld [vmem:[%s5] sm:$0xf]
    %v655 = vld [vmem:[%s5 + $0x4] sm:$0xf]
    %v656 = vld [vmem:[%s5 + $0x8] sm:$0xf]
    %v657 = vld [vmem:[%s5 + $0xc] sm:$0xf]
    %v658 = vld [vmem:[%s5 + $0x10] sm:$0xf]
    %v659 = vld [vmem:[%s5 + $0x14] sm:$0xf]
    %v660 = vld [vmem:[%s5 + $0x18] sm:$0xf]
    %v661 = vld [vmem:[%s5 + $0x1c] sm:$0xf]
    %v662 = vld [vmem:[%s5 + $0x20] sm:$0xf]
    %v663 = vld [vmem:[%s5 + $0x24] sm:$0xf]
    %v664 = vld [vmem:[%s5 + $0x28] sm:$0xf]
    %v665 = vld [vmem:[%s5 + $0x2c] sm:$0xf]
    %v666 = vld [vmem:[%s5 + $0x30] sm:$0xf]
    %v667 = vld [vmem:[%s5 + $0x34] sm:$0xf]
    %v668 = vld [vmem:[%s5 + $0x38] sm:$0xf]
    %v669 = vld [vmem:[%s5 + $0x3c] sm:$0xf]
    %v670 = vpack.c.bf16 %v639, %v638
    %v671 = vpack.c.bf16 %v641, %v640
    %v672 = vpack.c.bf16 %v643, %v642
    %v673 = vpack.c.bf16 %v645, %v644
    %v674 = vpack.c.bf16 %v647, %v646
    %v675 = vpack.c.bf16 %v649, %v648
    %v676 = vpack.c.bf16 %v651, %v650
    %v677 = vpack.c.bf16 %v653, %v652
    %v678 = vld [vmem:[%s6] sm:$0xff]
    %v679 = vld [vmem:[%s6 + $0x8] sm:$0xff]
    %v680 = vld [vmem:[%s6 + $0x10] sm:$0xff]
    %v681 = vld [vmem:[%s6 + $0x18] sm:$0xff]
    %v682 = vld [vmem:[%s6 + $0x20] sm:$0xff]
    %v683 = vld [vmem:[%s6 + $0x28] sm:$0xff]
    %v684 = vld [vmem:[%s6 + $0x30] sm:$0xff]
    %v685 = vld [vmem:[%s6 + $0x38] sm:$0xff]
    %v686 = vld [vmem:[%s6 + $0x40] sm:$0xff]
    %v687 = vld [vmem:[%s6 + $0x48] sm:$0xff]
    %v688 = vld [vmem:[%s6 + $0x50] sm:$0xff]
    %v689 = vld [vmem:[%s6 + $0x58] sm:$0xff]
    %v690 = vld [vmem:[%s6 + $0x60] sm:$0xff]
    %v691 = vld [vmem:[%s6 + $0x68] sm:$0xff]
    %v692 = vld [vmem:[%s6 + $0x70] sm:$0xff]
    %v693 = vld [vmem:[%s6 + $0x78] sm:$0xff]
    %695 = vset.pattern.permute.xlu0 0
    %696 = vperm.xlu0 %695, %v678
    %v697 = vpop.permute.xlu0 %696
    %700 = vset.pattern.permute.xlu0 0
    %701 = vperm.xlu0 %700, %v679
    %v702 = vpop.permute.xlu0 %701
    %705 = vset.pattern.permute.xlu0 0
    %706 = vperm.xlu0 %705, %v680
    %v707 = vpop.permute.xlu0 %706
    %710 = vset.pattern.permute.xlu0 0
    %711 = vperm.xlu0 %710, %v681
    %v712 = vpop.permute.xlu0 %711
    %715 = vset.pattern.permute.xlu0 0
    %716 = vperm.xlu0 %715, %v682
    %v717 = vpop.permute.xlu0 %716
    %720 = vset.pattern.permute.xlu0 0
    %721 = vperm.xlu0 %720, %v683
    %v722 = vpop.permute.xlu0 %721
    %725 = vset.pattern.permute.xlu0 0
    %726 = vperm.xlu0 %725, %v684
    %v727 = vpop.permute.xlu0 %726
    %730 = vset.pattern.permute.xlu0 0
    %731 = vperm.xlu0 %730, %v685
    %v732 = vpop.permute.xlu0 %731
    %735 = vset.pattern.permute.xlu0 0
    %736 = vperm.xlu0 %735, %v686
    %v737 = vpop.permute.xlu0 %736
    %740 = vset.pattern.permute.xlu0 0
    %741 = vperm.xlu0 %740, %v687
    %v742 = vpop.permute.xlu0 %741
    %745 = vset.pattern.permute.xlu0 0
    %746 = vperm.xlu0 %745, %v688
    %v747 = vpop.permute.xlu0 %746
    %750 = vset.pattern.permute.xlu0 0
    %751 = vperm.xlu0 %750, %v689
    %v752 = vpop.permute.xlu0 %751
    %755 = vset.pattern.permute.xlu0 0
    %756 = vperm.xlu0 %755, %v690
    %v757 = vpop.permute.xlu0 %756
    %760 = vset.pattern.permute.xlu0 0
    %761 = vperm.xlu0 %760, %v691
    %v762 = vpop.permute.xlu0 %761
    %765 = vset.pattern.permute.xlu0 0
    %766 = vperm.xlu0 %765, %v692
    %v767 = vpop.permute.xlu0 %766
    %770 = vset.pattern.permute.xlu0 0
    %771 = vperm.xlu0 %770, %v693
    %v772 = vpop.permute.xlu0 %771
    %v790 = vunpack.c.l.b16 %v654
    %v791 = vunpack.c.l.b16 %v655
    %v792 = vunpack.c.l.b16 %v656
    %v793 = vunpack.c.l.b16 %v657
    %v794 = vunpack.c.l.b16 %v658
    %v795 = vunpack.c.l.b16 %v659
    %v796 = vunpack.c.l.b16 %v660
    %v797 = vunpack.c.l.b16 %v661
    %v798 = vunpack.c.l.b16 %v662
    %v799 = vunpack.c.l.b16 %v663
    %v800 = vunpack.c.l.b16 %v664
    %v801 = vunpack.c.l.b16 %v665
    %v802 = vunpack.c.l.b16 %v666
    %v803 = vunpack.c.l.b16 %v667
    %v804 = vunpack.c.l.b16 %v668
    %v805 = vunpack.c.l.b16 %v669
    %v806 = vpack.c.b16 %v791, %v790
    %v807 = vpack.c.b16 %v793, %v792
    %v808 = vpack.c.b16 %v795, %v794
    %v809 = vpack.c.b16 %v797, %v796
    %v810 = vpack.c.b16 %v799, %v798
    %v811 = vpack.c.b16 %v801, %v800
    %v812 = vpack.c.b16 %v803, %v802
    %v813 = vpack.c.b16 %v805, %v804
    %822 = vmatprep.subr.bf16.mxu0 0
    %823 = vmatpush1.bf16.msra.mxu0 %v670
    %824 = vmatprep.subr.bf16.mxu0 0
    %825 = vmatpush1.bf16.msra.mxu0 %v671
    %826 = vmatprep.subr.bf16.mxu0 0
    %827 = vmatpush1.bf16.msra.mxu0 %v672
    %828 = vmatprep.subr.bf16.mxu0 0
    %829 = vmatpush1.bf16.msra.mxu0 %v673
    %830 = vmatprep.subr.bf16.mxu0 0
    %831 = vmatpush1.bf16.msra.mxu0 %v674
    %832 = vmatprep.subr.bf16.mxu0 0
    %833 = vmatpush1.bf16.msra.mxu0 %v675
    %834 = vmatprep.subr.bf16.mxu0 0
    %835 = vmatpush1.bf16.msra.mxu0 %v676
    %836 = vmatprep.subr.bf16.mxu0 0
    %837 = vmatpush1.bf16.msra.mxu0 %v677
    %838 = vmatprep.subr.bf16.mxu0 0
    %839 = vmatpush1.bf16.msra.mxu0 0
    %840 = vmatprep.subr.bf16.mxu0 0
    %841 = vmatpush1.bf16.msra.mxu0 0
    %842 = vmatprep.subr.bf16.mxu0 0
    %843 = vmatpush1.bf16.msra.mxu0 0
    %844 = vmatprep.subr.bf16.mxu0 0
    %845 = vmatpush1.bf16.msra.mxu0 0
    %846 = vmatprep.subr.bf16.mxu0 0
    %847 = vmatpush1.bf16.msra.mxu0 0
    %848 = vmatprep.subr.bf16.mxu0 0
    %849 = vmatpush1.bf16.msra.mxu0 0
    %850 = vmatprep.subr.bf16.mxu0 0
    %851 = vmatpush1.bf16.msra.mxu0 0
    %852 = vmatprep.subr.bf16.mxu0 0
    %853 = vmatpush1.bf16.msra.mxu0 0
    %854 = vmatprep.mubr.bf16.mxu0 0
    %855 = vmatmul.mubr.bf16.gmra.mrb[0].mxu0 %v806
    %v856 = vpop.f32.mrb[0].mxu0
    %v857 = vadd.f32 %v697, %v856
    %v858 = vpop.f32.mrb[0].mxu0
    %v859 = vpop.f32.mrb[0].mxu0
    %v860 = vadd.f32 %v702, %v859
    %v861 = vpop.f32.mrb[0].mxu0
    %862 = vmatprep.mubr.bf16.mxu0 0
    %863 = vmatmul.mubr.bf16.gmra.mrb[0].mxu0 %v807
    %v864 = vpop.f32.mrb[0].mxu0
    %v865 = vadd.f32 %v707, %v864
    %v866 = vpop.f32.mrb[0].mxu0
    %v867 = vpop.f32.mrb[0].mxu0
    %v868 = vadd.f32 %v712, %v867
    %v869 = vpop.f32.mrb[0].mxu0
    %870 = vmatprep.mubr.bf16.mxu0 0
    %871 = vmatmul.mubr.bf16.gmra.mrb[0].mxu0 %v808
    %v872 = vpop.f32.mrb[0].mxu0
    %v873 = vadd.f32 %v717, %v872
    %v874 = vpop.f32.mrb[0].mxu0
    %v875 = vpop.f32.mrb[0].mxu0
    %v876 = vadd.f32 %v722, %v875
    %v877 = vpop.f32.mrb[0].mxu0
    %878 = vmatprep.mubr.bf16.mxu0 0
    %879 = vmatmul.mubr.bf16.gmra.mrb[0].mxu0 %v809
    %v880 = vpop.f32.mrb[0].mxu0
    %v881 = vadd.f32 %v727, %v880
    %v882 = vpop.f32.mrb[0].mxu0
    %v883 = vpop.f32.mrb[0].mxu0
    %v884 = vadd.f32 %v732, %v883
    %v885 = vpop.f32.mrb[0].mxu0
    %886 = vmatprep.mubr.bf16.mxu0 0
    %887 = vmatmul.mubr.bf16.gmra.mrb[0].mxu0 %v810
    %v888 = vpop.f32.mrb[0].mxu0
    %v889 = vadd.f32 %v737, %v888
    %v890 = vpop.f32.mrb[0].mxu0
    %v891 = vpop.f32.mrb[0].mxu0
    %v892 = vadd.f32 %v742, %v891
    %v893 = vpop.f32.mrb[0].mxu0
    %894 = vmatprep.mubr.bf16.mxu0 0
    %895 = vmatmul.mubr.bf16.gmra.mrb[0].mxu0 %v811
    %v896 = vpop.f32.mrb[0].mxu0
    %v897 = vadd.f32 %v747, %v896
    %v898 = vpop.f32.mrb[0].mxu0
    %v899 = vpop.f32.mrb[0].mxu0
    %v900 = vadd.f32 %v752, %v899
    %v901 = vpop.f32.mrb[0].mxu0
    %902 = vmatprep.mubr.bf16.mxu0 0
    %903 = vmatmul.mubr.bf16.gmra.mrb[0].mxu0 %v812
    %v904 = vpop.f32.mrb[0].mxu0
    %v905 = vadd.f32 %v757, %v904
    %v906 = vpop.f32.mrb[0].mxu0
    %v907 = vpop.f32.mrb[0].mxu0
    %v908 = vadd.f32 %v762, %v907
    %v909 = vpop.f32.mrb[0].mxu0
    %910 = vmatprep.mubr.bf16.mxu0 0
    %911 = vmatmul.mubr.bf16.gmra.mrb[0].mxu0 %v813
    %v912 = vpop.f32.mrb[0].mxu0
    %v913 = vadd.f32 %v767, %v912
    %v914 = vpop.f32.mrb[0].mxu0
    %v915 = vpop.f32.mrb[0].mxu0
    %v916 = vadd.f32 %v772, %v915
    %v917 = vpop.f32.mrb[0].mxu0
    %918 = vdwg.mxu0
    %v919 = vmax.f32 %v857, 0.0
    %v920 = vmax.f32 %v860, 0.0
    %v921 = vmax.f32 %v865, 0.0
    %v922 = vmax.f32 %v868, 0.0
    %v923 = vmax.f32 %v873, 0.0
    %v924 = vmax.f32 %v876, 0.0
    %v925 = vmax.f32 %v881, 0.0
    %v926 = vmax.f32 %v884, 0.0
    %v927 = vmax.f32 %v889, 0.0
    %v928 = vmax.f32 %v892, 0.0
    %v929 = vmax.f32 %v897, 0.0
    %v930 = vmax.f32 %v900, 0.0
    %v931 = vmax.f32 %v905, 0.0
    %v932 = vmax.f32 %v908, 0.0
    %v933 = vmax.f32 %v913, 0.0
    %v934 = vmax.f32 %v916, 0.0
    %v935 = vld [vmem:[%s7] sm:$0xff]
    %v936 = vld [vmem:[%s7 + $0x8] sm:$0xff]
    %v937 = vld [vmem:[%s7 + $0x10] sm:$0xff]
    %v938 = vld [vmem:[%s7 + $0x18] sm:$0xff]
    %v939 = vld [vmem:[%s7 + $0x20] sm:$0xff]
    %v940 = vld [vmem:[%s7 + $0x28] sm:$0xff]
    %v941 = vld [vmem:[%s7 + $0x30] sm:$0xff]
    %v942 = vld [vmem:[%s7 + $0x38] sm:$0xff]
    %v943 = vld [vmem:[%s7 + $0x40] sm:$0xff]
    %v944 = vld [vmem:[%s7 + $0x48] sm:$0xff]
    %v945 = vld [vmem:[%s7 + $0x50] sm:$0xff]
    %v946 = vld [vmem:[%s7 + $0x58] sm:$0xff]
    %v947 = vld [vmem:[%s7 + $0x60] sm:$0xff]
    %v948 = vld [vmem:[%s7 + $0x68] sm:$0xff]
    %v949 = vld [vmem:[%s7 + $0x70] sm:$0xff]
    %v950 = vld [vmem:[%s7 + $0x78] sm:$0xff]
    %952 = vset.pattern.permute.xlu0 0
    %953 = vperm.xlu0 %952, %v935
    %v954 = vpop.permute.xlu0 %953
    %957 = vset.pattern.permute.xlu0 0
    %958 = vperm.xlu0 %957, %v936
    %v959 = vpop.permute.xlu0 %958
    %962 = vset.pattern.permute.xlu0 0
    %963 = vperm.xlu0 %962, %v937
    %v964 = vpop.permute.xlu0 %963
    %967 = vset.pattern.permute.xlu0 0
    %968 = vperm.xlu0 %967, %v938
    %v969 = vpop.permute.xlu0 %968
    %972 = vset.pattern.permute.xlu0 0
    %973 = vperm.xlu0 %972, %v939
    %v974 = vpop.permute.xlu0 %973
    %977 = vset.pattern.permute.xlu0 0
    %978 = vperm.xlu0 %977, %v940
    %v979 = vpop.permute.xlu0 %978
    %982 = vset.pattern.permute.xlu0 0
    %983 = vperm.xlu0 %982, %v941
    %v984 = vpop.permute.xlu0 %983
    %987 = vset.pattern.permute.xlu0 0
    %988 = vperm.xlu0 %987, %v942
    %v989 = vpop.permute.xlu0 %988
    %992 = vset.pattern.permute.xlu0 0
    %993 = vperm.xlu0 %992, %v943
    %v994 = vpop.permute.xlu0 %993
    %997 = vset.pattern.permute.xlu0 0
    %998 = vperm.xlu0 %997, %v944
    %v999 = vpop.permute.xlu0 %998
    %1002 = vset.pattern.permute.xlu0 0
    %1003 = vperm.xlu0 %1002, %v945
    %v1004 = vpop.permute.xlu0 %1003
    %1007 = vset.pattern.permute.xlu0 0
    %1008 = vperm.xlu0 %1007, %v946
    %v1009 = vpop.permute.xlu0 %1008
    %1012 = vset.pattern.permute.xlu0 0
    %1013 = vperm.xlu0 %1012, %v947
    %v1014 = vpop.permute.xlu0 %1013
    %1017 = vset.pattern.permute.xlu0 0
    %1018 = vperm.xlu0 %1017, %v948
    %v1019 = vpop.permute.xlu0 %1018
    %1022 = vset.pattern.permute.xlu0 0
    %1023 = vperm.xlu0 %1022, %v949
    %v1024 = vpop.permute.xlu0 %1023
    %1027 = vset.pattern.permute.xlu0 0
    %1028 = vperm.xlu0 %1027, %v950
    %v1029 = vpop.permute.xlu0 %1028
    %v1031 = vmul.f32 %v919, %v954
    %v1032 = vmul.f32 %v920, %v959
    %v1033 = vmul.f32 %v921, %v964
    %v1034 = vmul.f32 %v922, %v969
    %v1035 = vmul.f32 %v923, %v974
    %v1036 = vmul.f32 %v924, %v979
    %v1037 = vmul.f32 %v925, %v984
    %v1038 = vmul.f32 %v926, %v989
    %v1039 = vmul.f32 %v927, %v994
    %v1040 = vmul.f32 %v928, %v999
    %v1041 = vmul.f32 %v929, %v1004
    %v1042 = vmul.f32 %v930, %v1009
    %v1043 = vmul.f32 %v931, %v1014
    %v1044 = vmul.f32 %v932, %v1019
    %v1045 = vmul.f32 %v933, %v1024
    %v1046 = vmul.f32 %v934, %v1029
    %v1047 = vadd.f32 %v1031, %v1032
    %v1048 = vadd.f32 %v1047, %v1033
    %v1049 = vadd.f32 %v1048, %v1034
    %v1050 = vadd.f32 %v1049, %v1035
    %v1051 = vadd.f32 %v1050, %v1036
    %v1052 = vadd.f32 %v1051, %v1037
    %v1053 = vadd.f32 %v1052, %v1038
    %v1054 = vadd.f32 %v1053, %v1039
    %v1055 = vadd.f32 %v1054, %v1040
    %v1056 = vadd.f32 %v1055, %v1041
    %v1057 = vadd.f32 %v1056, %v1042
    %v1058 = vadd.f32 %v1057, %v1043
    %v1059 = vadd.f32 %v1058, %v1044
    %v1060 = vadd.f32 %v1059, %v1045
    %v1061 = vadd.f32 %v1060, %v1046
    %v1062 = vrot.slane %v1061, 4
    %v1063 = vadd.f32 %v1061, %v1062
    %v1064 = vrot.slane %v1063, 2
    %v1065 = vadd.f32 %v1063, %v1064
    %v1066 = vrot.slane %v1065, 1
    %v1067 = vadd.f32 %v1065, %v1066
    %v1068 = vld [vmem:[#allocation2] sm:$0x1]
    %1070 = vset.pattern.permute.xlu0 0
    %1071 = vperm.xlu0 %1070, %v1068
    %v1072 = vpop.permute.xlu0 %1071
    %v1074 = vlaneseq
    %v1075 = vshrl.u32 %v1074, 7
    %v1076 = vsub.s32 0, %v1075
    %v1077 = vrot.slane %v1072, %v1076
    %v1078 = vadd.f32 %v1067, %v1077
    %1079 = vst [vmem:[#allocation3] sm:$0x1] %v1078
    // Predicated region
    $region38: #{tpu_custom_call.1} parent=1 // pred_check
      _
    $region39: #{tpu_custom_call.1} parent=1 // pred_check_branch
      %1081 = sbr.rel (0) target = $region41
    $region40: #{tpu_custom_call.1} parent=1 // pred_region
      %s1083 = ssub.s32 16, 16
      %1084 = vsyncadd [#allocation4], %s1083
      %s1086 = sshll.u32 [#allocation3], 4
      %s1087 = int_to_ptr.vmem [resolvable:$true] %s1086
      %1089 = dma.vmem_to_hbm [thread:$0]  %s1087, 16, %s9, [#allocation4]
    $region41: #{tpu_custom_call.1} parent=1 // pred_fallthru
      _
    // Predicated region
    $region42: #{tpu_custom_call.1} parent=1 // pred_check
      _
    $region43: #{tpu_custom_call.1} parent=1 // pred_check_branch
      %1091 = sbr.rel (0) target = $region45
    $region44: #{tpu_custom_call.1} parent=1 // pred_region
      %1092 = dma.done [#allocation4], 16
    $region45: #{tpu_custom_call.1} parent=1 // pred_fallthru
      _
    %1093 = vsyncpa [#allocation4], 1

</llo_original>
